<compile_context>
chip_gen: v5e
topology: v5e:2x2
jax: 0.10.0
libtpu: 0.0.40
codegen_flags: <defaults>
</compile_context>

<pallas_src>
import jax
import jax.numpy as jnp
from jax import lax
from jax.experimental import pallas as pl
from jax.experimental.pallas import tpu as pltpu

EPS = 1e-3  # matches BatchNorm2d(48, eps=0.001) in the PyTorch module


def conv_bn_relu_kernel(x_ref, w_ref, gamma_ref, beta_ref, o_ref):
    # x_ref:     (Cin, M)    input, free reshape of NCHW (N=1)
    # w_ref:     (Cout, Cin) 1x1 conv weight (native PyTorch layout, squeezed)
    # gamma_ref: (Cout, 1)   BN weight
    # beta_ref:  (Cout, 1)   BN bias
    # o_ref:     (Cout, M)   output, free reshape to NCHW (N=1)
    x = x_ref[...]
    w = w_ref[...]

    # 1x1 convolution == matmul on the MXU: (Cout, Cin) @ (Cin, M) -> (Cout, M)
    y = jnp.dot(w, x, preferred_element_type=jnp.float32)

    # BatchNorm2d training-mode batch statistics: per output channel (row),
    # over the logical M = N*H*W elements (jnp.mean normalizes by the logical
    # size, independent of lane padding). Biased variance, as PyTorch uses
    # for normalization.
    mean = jnp.mean(y, axis=1, keepdims=True)                  # (Cout, 1)
    centered = y - mean
    var = jnp.mean(centered * centered, axis=1, keepdims=True)  # (Cout, 1)
    inv_std = lax.rsqrt(var + EPS)

    # Fold BN affine into one FMA per element: (y - mean) * (gamma/std) + beta
    scale = gamma_ref[...] * inv_std                            # (Cout, 1)
    o_ref[...] = jnp.maximum(centered * scale + beta_ref[...], 0.0)


def conv_bn_relu(x_nchw, weight, gamma, beta):
    """x_nchw: (N, Cin, H, W) f32; weight: (Cout, Cin) f32 (1x1 conv kernel)."""
    N, Cin, H, W = x_nchw.shape
    Cout = weight.shape[0]
    M = N * H * W

    # NCHW -> (Cin, M). For N == 1 this is a pure (free) reshape — no
    # transpose kernel, no extra HBM round trip.
    if N == 1:
        x2d = x_nchw.reshape(Cin, M)
    else:
        x2d = jnp.transpose(x_nchw, (1, 0, 2, 3)).reshape(Cin, M)

    gamma2 = gamma.reshape(Cout, 1)
    beta2 = beta.reshape(Cout, 1)

    # Advisory cost hint so XLA schedules neighboring ops sensibly around the
    # (latency-bound) custom call.
    cost = pl.CostEstimate(
        flops=2 * Cout * Cin * M + 6 * Cout * M,
        transcendentals=Cout,
        bytes_accessed=4 * (Cin * M + Cout * Cin + 2 * Cout + Cout * M),
    )

    vmem_spec = pl.BlockSpec(memory_space=pltpu.MemorySpace.VMEM)
    out2d = pl.pallas_call(
        conv_bn_relu_kernel,
        out_shape=jax.ShapeDtypeStruct((Cout, M), jnp.float32),
        in_specs=[vmem_spec, vmem_spec, vmem_spec, vmem_spec],
        out_specs=vmem_spec,
        cost_estimate=cost,
    )(x2d, weight, gamma2, beta2)

    # (Cout, M) -> NCHW. For N == 1 this is again a pure reshape.
    if N == 1:
        return out2d.reshape(N, Cout, H, W)
    return out2d.reshape(Cout, N, H, W).transpose(1, 0, 2, 3)


def reference(x_nchw, weight, gamma, beta):
    """Pure-JAX reference with an independent (M, Cin) x (Cin, Cout) formulation."""
    N, Cin, H, W = x_nchw.shape
    Cout = weight.shape[0]
    x_flat = jnp.transpose(x_nchw, (0, 2, 3, 1)).reshape(-1, Cin)
    y = x_flat @ weight.T
    mean = jnp.mean(y, axis=0, keepdims=True)
    var = jnp.mean((y - mean) ** 2, axis=0, keepdims=True)
    y = (y - mean) / jnp.sqrt(var + EPS)
    y = y * gamma[None, :] + beta[None, :]
    y = jnp.maximum(y, 0.0)
    return y.reshape(N, H, W, Cout).transpose(0, 3, 1, 2)


if __name__ == "__main__":
    key = jax.random.PRNGKey(0)
    k_x, k_w, k_g, k_b = jax.random.split(key, 4)

    # Shapes from the original module: Conv2d(832, 48, 1x1, bias=False) on
    # input (1, 832, 7, 7).
    N, Cin, H, W, Cout = 1, 832, 7, 7, 48

    x = jax.random.normal(k_x, (N, Cin, H, W), dtype=jnp.float32)
    weight = jax.random.normal(k_w, (Cout, Cin), dtype=jnp.float32) * (1.0 / (Cin ** 0.5))
    # Non-trivial BN affine parameters to exercise the fused scale/shift path.
    gamma = 1.0 + 0.1 * jax.random.normal(k_g, (Cout,), dtype=jnp.float32)
    beta = 0.1 * jax.random.normal(k_b, (Cout,), dtype=jnp.float32)

    out = conv_bn_relu(x, weight, gamma, beta)
    out = jax.block_until_ready(out)

    ref = reference(x, weight, gamma, beta)
    assert out.shape == (N, Cout, H, W), out.shape
    assert jnp.allclose(out, ref, atol=1e-4, rtol=1e-4), "mismatch vs reference"

    print("KERNEL_OK")
</pallas_src>

<mosaic_0001>
module attributes {stable_mosaic.version = 11 : i64} {
  func.func @conv_bn_relu_kernel(%arg0: memref<832x49xf32, #tpu.memory_space<vmem>>, %arg1: memref<48x832xf32, #tpu.memory_space<vmem>>, %arg2: memref<48x1xf32, #tpu.memory_space<vmem>>, %arg3: memref<48x1xf32, #tpu.memory_space<vmem>>, %arg4: memref<48x49xf32, #tpu.memory_space<vmem>>) attributes {dimension_semantics = [], scalar_prefetch = 0 : i64, scratch_operands = 0 : i64, tpu.core_type = #tpu.core_type<tc>} {
    %c0 = arith.constant 0 : index
    %c0_0 = arith.constant 0 : index
    %0 = vector.load %arg0[%c0, %c0_0] : memref<832x49xf32, #tpu.memory_space<vmem>>, vector<832x49xf32>
    %c0_1 = arith.constant 0 : index
    %c0_2 = arith.constant 0 : index
    %1 = vector.load %arg1[%c0_1, %c0_2] : memref<48x832xf32, #tpu.memory_space<vmem>>, vector<48x832xf32>
    %cst = arith.constant dense<0.000000e+00> : vector<48x49xf32>
    %2 = tpu.matmul %1, %0, %cst {dimension_numbers = #tpu.dot_dimension_numbers<[1], [0], [0], [1], [0, 0, 1, 1], [], []>} : vector<48x832xf32>, vector<832x49xf32>, vector<48x49xf32> -> vector<48x49xf32>
    %cst_3 = arith.constant dense<0.000000e+00> : vector<48xf32>
    %3 = vector.multi_reduction <add>, %2, %cst_3 [1] : vector<48x49xf32> to vector<48xf32>
    %4 = vector.shape_cast %3 : vector<48xf32> to vector<48x1xf32>
    %cst_4 = arith.constant 4.900000e+01 : f32
    %5 = vector.broadcast %cst_4 : f32 to vector<48x1xf32>
    %6 = arith.divf %4, %5 : vector<48x1xf32>
    %7 = vector.broadcast %6 : vector<48x1xf32> to vector<48x49xf32>
    %8 = arith.subf %2, %7 : vector<48x49xf32>
    %9 = arith.mulf %8, %8 : vector<48x49xf32>
    %cst_5 = arith.constant dense<0.000000e+00> : vector<48xf32>
    %10 = vector.multi_reduction <add>, %9, %cst_5 [1] : vector<48x49xf32> to vector<48xf32>
    %11 = vector.shape_cast %10 : vector<48xf32> to vector<48x1xf32>
    %cst_6 = arith.constant 4.900000e+01 : f32
    %12 = vector.broadcast %cst_6 : f32 to vector<48x1xf32>
    %13 = arith.divf %11, %12 : vector<48x1xf32>
    %cst_7 = arith.constant 1.000000e-03 : f32
    %14 = vector.broadcast %cst_7 : f32 to vector<48x1xf32>
    %15 = arith.addf %13, %14 : vector<48x1xf32>
    %16 = math.rsqrt %15 : vector<48x1xf32>
    %c0_8 = arith.constant 0 : index
    %c0_9 = arith.constant 0 : index
    %17 = vector.load %arg2[%c0_8, %c0_9] : memref<48x1xf32, #tpu.memory_space<vmem>>, vector<48x1xf32>
    %18 = arith.mulf %17, %16 : vector<48x1xf32>
    %19 = vector.broadcast %18 : vector<48x1xf32> to vector<48x49xf32>
    %20 = arith.mulf %8, %19 : vector<48x49xf32>
    %c0_10 = arith.constant 0 : index
    %c0_11 = arith.constant 0 : index
    %21 = vector.load %arg3[%c0_10, %c0_11] : memref<48x1xf32, #tpu.memory_space<vmem>>, vector<48x1xf32>
    %22 = vector.broadcast %21 : vector<48x1xf32> to vector<48x49xf32>
    %23 = arith.addf %20, %22 : vector<48x49xf32>
    %cst_12 = arith.constant 0.000000e+00 : f32
    %24 = vector.broadcast %cst_12 : f32 to vector<48x49xf32>
    %25 = arith.maximumf %23, %24 : vector<48x49xf32>
    %c0_13 = arith.constant 0 : index
    %c0_14 = arith.constant 0 : index
    %26 = vector.load %arg4[%c0_13, %c0_14] : memref<48x49xf32, #tpu.memory_space<vmem>>, vector<48x49xf32>
    tpu.vector_store %arg4[%c0_13, %c0_14], %25 {strides = array<i32>} : memref<48x49xf32, #tpu.memory_space<vmem>>, vector<48x49xf32>,
    return
  }
}

</mosaic_0001>

<llo_original>
// kernel: tpu_custom_call.1
$region0: #{tpu_custom_call.1}
  #allocation0 [shape = 'u32[]', space=smem, size = 0x4, offset = 0x4, fixed_abs, tag = 'smem constant byte address 0x4 - core index']
  #allocation1 [shape = 'u32[72,128]{1,0:T(1,128)}', space=vmem, size = 0x9000, scoped, tag = 'internal scratch']
  %s0 = inlined_call_operand.vmem [shape: f32[832,49], index: 0, kind: input, shape index: {}]
  %s1 = inlined_call_operand.vmem [shape: f32[48,832], index: 1, kind: input, shape index: {}]
  %s2 = inlined_call_operand.vmem [shape: f32[48,1], index: 2, kind: input, shape index: {}]
  %s3 = inlined_call_operand.vmem [shape: f32[48,1], index: 3, kind: input, shape index: {}]
  %s4 = inlined_call_operand.hbm [shape: f32[48,49], index: 4, kind: output, shape index: {}]
  %s5 = sld [smem:[#allocation0]]
  $region26: #{tpu_custom_call.1} parent=0
    _
  %s7 = ssub.s32 1, %s5
  %s8 = scalar_select 0, %s7, %s5
  $region1: #{tpu_custom_call.1} parent=0
    #allocation2 [shape = 'u8[24576]{0}', space=vmem, size = 0x6000, scoped, tag = 'output window, operand 0, single buffered']
    #allocation3 [shape = 's32[1]{0}', space=sflag, size = 0x4, scoped, tag = 'scoped memory for tpu_custom_call.1']
    %9 = vsyncpa [#allocation3], 0
    // Predicated region
    $region2: #{tpu_custom_call.1} parent=1 // pred_check
      _
    $region3: #{tpu_custom_call.1} parent=1 // pred_check_branch
      %11 = sbr.rel (0) target = $region5
    $region4: #{tpu_custom_call.1} parent=1 // pred_region
      _
    $region5: #{tpu_custom_call.1} parent=1 // pred_fallthru
      _
    // Predicated region
    $region6: #{tpu_custom_call.1} parent=1 // pred_check
      _
    $region7: #{tpu_custom_call.1} parent=1 // pred_check_branch
      %13 = sbr.rel (0) target = $region9
    $region8: #{tpu_custom_call.1} parent=1 // pred_region
      _
    $region9: #{tpu_custom_call.1} parent=1 // pred_fallthru
      _
    // Predicated region
    $region10: #{tpu_custom_call.1} parent=1 // pred_check
      _
    $region11: #{tpu_custom_call.1} parent=1 // pred_check_branch
      %15 = sbr.rel (0) target = $region13
    $region12: #{tpu_custom_call.1} parent=1 // pred_region
      _
    $region13: #{tpu_custom_call.1} parent=1 // pred_fallthru
      _
    // Predicated region
    $region14: #{tpu_custom_call.1} parent=1 // pred_check
      _
    $region15: #{tpu_custom_call.1} parent=1 // pred_check_branch
      %17 = sbr.rel (0) target = $region17
    $region16: #{tpu_custom_call.1} parent=1 // pred_region
      _
    $region17: #{tpu_custom_call.1} parent=1 // pred_fallthru
      _
    %v18 = vld [vmem:[%s0] sm:$0xff]
    %v19 = vld [vmem:[%s0 + $0x8] sm:$0xff]
    %v20 = vld [vmem:[%s0 + $0x10] sm:$0xff]
    %v21 = vld [vmem:[%s0 + $0x18] sm:$0xff]
    %v22 = vld [vmem:[%s0 + $0x20] sm:$0xff]
    %v23 = vld [vmem:[%s0 + $0x28] sm:$0xff]
    %v24 = vld [vmem:[%s0 + $0x30] sm:$0xff]
    %v25 = vld [vmem:[%s0 + $0x38] sm:$0xff]
    %v26 = vld [vmem:[%s0 + $0x40] sm:$0xff]
    %v27 = vld [vmem:[%s0 + $0x48] sm:$0xff]
    %v28 = vld [vmem:[%s0 + $0x50] sm:$0xff]
    %v29 = vld [vmem:[%s0 + $0x58] sm:$0xff]
    %v30 = vld [vmem:[%s0 + $0x60] sm:$0xff]
    %v31 = vld [vmem:[%s0 + $0x68] sm:$0xff]
    %v32 = vld [vmem:[%s0 + $0x70] sm:$0xff]
    %v33 = vld [vmem:[%s0 + $0x78] sm:$0xff]
    %v34 = vld [vmem:[%s0 + $0x80] sm:$0xff]
    %v35 = vld [vmem:[%s0 + $0x88] sm:$0xff]
    %v36 = vld [vmem:[%s0 + $0x90] sm:$0xff]
    %v37 = vld [vmem:[%s0 + $0x98] sm:$0xff]
    %v38 = vld [vmem:[%s0 + $0xa0] sm:$0xff]
    %v39 = vld [vmem:[%s0 + $0xa8] sm:$0xff]
    %v40 = vld [vmem:[%s0 + $0xb0] sm:$0xff]
    %v41 = vld [vmem:[%s0 + $0xb8] sm:$0xff]
    %v42 = vld [vmem:[%s0 + $0xc0] sm:$0xff]
    %v43 = vld [vmem:[%s0 + $0xc8] sm:$0xff]
    %v44 = vld [vmem:[%s0 + $0xd0] sm:$0xff]
    %v45 = vld [vmem:[%s0 + $0xd8] sm:$0xff]
    %v46 = vld [vmem:[%s0 + $0xe0] sm:$0xff]
    %v47 = vld [vmem:[%s0 + $0xe8] sm:$0xff]
    %v48 = vld [vmem:[%s0 + $0xf0] sm:$0xff]
    %v49 = vld [vmem:[%s0 + $0xf8] sm:$0xff]
    %v50 = vld [vmem:[%s0 + $0x100] sm:$0xff]
    %v51 = vld [vmem:[%s0 + $0x108] sm:$0xff]
    %v52 = vld [vmem:[%s0 + $0x110] sm:$0xff]
    %v53 = vld [vmem:[%s0 + $0x118] sm:$0xff]
    %v54 = vld [vmem:[%s0 + $0x120] sm:$0xff]
    %v55 = vld [vmem:[%s0 + $0x128] sm:$0xff]
    %v56 = vld [vmem:[%s0 + $0x130] sm:$0xff]
    %v57 = vld [vmem:[%s0 + $0x138] sm:$0xff]
    %v58 = vld [vmem:[%s0 + $0x140] sm:$0xff]
    %v59 = vld [vmem:[%s0 + $0x148] sm:$0xff]
    %v60 = vld [vmem:[%s0 + $0x150] sm:$0xff]
    %v61 = vld [vmem:[%s0 + $0x158] sm:$0xff]
    %v62 = vld [vmem:[%s0 + $0x160] sm:$0xff]
    %v63 = vld [vmem:[%s0 + $0x168] sm:$0xff]
    %v64 = vld [vmem:[%s0 + $0x170] sm:$0xff]
    %v65 = vld [vmem:[%s0 + $0x178] sm:$0xff]
    %v66 = vld [vmem:[%s0 + $0x180] sm:$0xff]
    %v67 = vld [vmem:[%s0 + $0x188] sm:$0xff]
    %v68 = vld [vmem:[%s0 + $0x190] sm:$0xff]
    %v69 = vld [vmem:[%s0 + $0x198] sm:$0xff]
    %v70 = vld [vmem:[%s0 + $0x1a0] sm:$0xff]
    %v71 = vld [vmem:[%s0 + $0x1a8] sm:$0xff]
    %v72 = vld [vmem:[%s0 + $0x1b0] sm:$0xff]
    %v73 = vld [vmem:[%s0 + $0x1b8] sm:$0xff]
    %v74 = vld [vmem:[%s0 + $0x1c0] sm:$0xff]
    %v75 = vld [vmem:[%s0 + $0x1c8] sm:$0xff]
    %v76 = vld [vmem:[%s0 + $0x1d0] sm:$0xff]
    %v77 = vld [vmem:[%s0 + $0x1d8] sm:$0xff]
    %v78 = vld [vmem:[%s0 + $0x1e0] sm:$0xff]
    %v79 = vld [vmem:[%s0 + $0x1e8] sm:$0xff]
    %v80 = vld [vmem:[%s0 + $0x1f0] sm:$0xff]
    %v81 = vld [vmem:[%s0 + $0x1f8] sm:$0xff]
    %v82 = vld [vmem:[%s0 + $0x200] sm:$0xff]
    %v83 = vld [vmem:[%s0 + $0x208] sm:$0xff]
    %v84 = vld [vmem:[%s0 + $0x210] sm:$0xff]
    %v85 = vld [vmem:[%s0 + $0x218] sm:$0xff]
    %v86 = vld [vmem:[%s0 + $0x220] sm:$0xff]
    %v87 = vld [vmem:[%s0 + $0x228] sm:$0xff]
    %v88 = vld [vmem:[%s0 + $0x230] sm:$0xff]
    %v89 = vld [vmem:[%s0 + $0x238] sm:$0xff]
    %v90 = vld [vmem:[%s0 + $0x240] sm:$0xff]
    %v91 = vld [vmem:[%s0 + $0x248] sm:$0xff]
    %v92 = vld [vmem:[%s0 + $0x250] sm:$0xff]
    %v93 = vld [vmem:[%s0 + $0x258] sm:$0xff]
    %v94 = vld [vmem:[%s0 + $0x260] sm:$0xff]
    %v95 = vld [vmem:[%s0 + $0x268] sm:$0xff]
    %v96 = vld [vmem:[%s0 + $0x270] sm:$0xff]
    %v97 = vld [vmem:[%s0 + $0x278] sm:$0xff]
    %v98 = vld [vmem:[%s0 + $0x280] sm:$0xff]
    %v99 = vld [vmem:[%s0 + $0x288] sm:$0xff]
    %v100 = vld [vmem:[%s0 + $0x290] sm:$0xff]
    %v101 = vld [vmem:[%s0 + $0x298] sm:$0xff]
    %v102 = vld [vmem:[%s0 + $0x2a0] sm:$0xff]
    %v103 = vld [vmem:[%s0 + $0x2a8] sm:$0xff]
    %v104 = vld [vmem:[%s0 + $0x2b0] sm:$0xff]
    %v105 = vld [vmem:[%s0 + $0x2b8] sm:$0xff]
    %v106 = vld [vmem:[%s0 + $0x2c0] sm:$0xff]
    %v107 = vld [vmem:[%s0 + $0x2c8] sm:$0xff]
    %v108 = vld [vmem:[%s0 + $0x2d0] sm:$0xff]
    %v109 = vld [vmem:[%s0 + $0x2d8] sm:$0xff]
    %v110 = vld [vmem:[%s0 + $0x2e0] sm:$0xff]
    %v111 = vld [vmem:[%s0 + $0x2e8] sm:$0xff]
    %v112 = vld [vmem:[%s0 + $0x2f0] sm:$0xff]
    %v113 = vld [vmem:[%s0 + $0x2f8] sm:$0xff]
    %v114 = vld [vmem:[%s0 + $0x300] sm:$0xff]
    %v115 = vld [vmem:[%s0 + $0x308] sm:$0xff]
    %v116 = vld [vmem:[%s0 + $0x310] sm:$0xff]
    %v117 = vld [vmem:[%s0 + $0x318] sm:$0xff]
    %v118 = vld [vmem:[%s0 + $0x320] sm:$0xff]
    %v119 = vld [vmem:[%s0 + $0x328] sm:$0xff]
    %v120 = vld [vmem:[%s0 + $0x330] sm:$0xff]
    %v121 = vld [vmem:[%s0 + $0x338] sm:$0xff]
    %v122 = vld [vmem:[%s1] sm:$0xff]
    %v123 = vld [vmem:[%s1 + $0x8] sm:$0xff]
    %v124 = vld [vmem:[%s1 + $0x10] sm:$0xff]
    %v125 = vld [vmem:[%s1 + $0x18] sm:$0xff]
    %v126 = vld [vmem:[%s1 + $0x20] sm:$0xff]
    %v127 = vld [vmem:[%s1 + $0x28] sm:$0xff]
    %v128 = vld [vmem:[%s1 + $0x30] sm:$0xff]
    %v129 = vld [vmem:[%s1 + $0x38] sm:$0xff]
    %v130 = vld [vmem:[%s1 + $0x40] sm:$0xff]
    %v131 = vld [vmem:[%s1 + $0x48] sm:$0xff]
    %v132 = vld [vmem:[%s1 + $0x50] sm:$0xff]
    %v133 = vld [vmem:[%s1 + $0x58] sm:$0xff]
    %v134 = vld [vmem:[%s1 + $0x60] sm:$0xff]
    %v135 = vld [vmem:[%s1 + $0x68] sm:$0xff]
    %v136 = vld [vmem:[%s1 + $0x70] sm:$0xff]
    %v137 = vld [vmem:[%s1 + $0x78] sm:$0xff]
    %v138 = vld [vmem:[%s1 + $0x80] sm:$0xff]
    %v139 = vld [vmem:[%s1 + $0x88] sm:$0xff]
    %v140 = vld [vmem:[%s1 + $0x90] sm:$0xff]
    %v141 = vld [vmem:[%s1 + $0x98] sm:$0xff]
    %v142 = vld [vmem:[%s1 + $0xa0] sm:$0xff]
    %v143 = vld [vmem:[%s1 + $0xa8] sm:$0xff]
    %v144 = vld [vmem:[%s1 + $0xb0] sm:$0xff]
    %v145 = vld [vmem:[%s1 + $0xb8] sm:$0xff]
    %v146 = vld [vmem:[%s1 + $0xc0] sm:$0xff]
    %v147 = vld [vmem:[%s1 + $0xc8] sm:$0xff]
    %v148 = vld [vmem:[%s1 + $0xd0] sm:$0xff]
    %v149 = vld [vmem:[%s1 + $0xd8] sm:$0xff]
    %v150 = vld [vmem:[%s1 + $0xe0] sm:$0xff]
    %v151 = vld [vmem:[%s1 + $0xe8] sm:$0xff]
    %v152 = vld [vmem:[%s1 + $0xf0] sm:$0xff]
    %v153 = vld [vmem:[%s1 + $0xf8] sm:$0xff]
    %v154 = vld [vmem:[%s1 + $0x100] sm:$0xff]
    %v155 = vld [vmem:[%s1 + $0x108] sm:$0xff]
    %v156 = vld [vmem:[%s1 + $0x110] sm:$0xff]
    %v157 = vld [vmem:[%s1 + $0x118] sm:$0xff]
    %v158 = vld [vmem:[%s1 + $0x120] sm:$0xff]
    %v159 = vld [vmem:[%s1 + $0x128] sm:$0xff]
    %v160 = vld [vmem:[%s1 + $0x130] sm:$0xff]
    %v161 = vld [vmem:[%s1 + $0x138] sm:$0xff]
    %v162 = vld [vmem:[%s1 + $0x140] sm:$0xff]
    %v163 = vld [vmem:[%s1 + $0x148] sm:$0xff]
    %vm164 = vcmask 523264
    %v166 = vsel %vm164, %v128, 0
    %v169 = vsel %vm164, %v135, 0
    %v172 = vsel %vm164, %v142, 0
    %v175 = vsel %vm164, %v149, 0
    %v178 = vsel %vm164, %v156, 0
    %v181 = vsel %vm164, %v163, 0
    %183 = vmatpush.msra.mxu0 %v33
    %184 = vmatpush.msra.mxu0 %v32
    %185 = vmatpush.msra.mxu0 %v31
    %186 = vmatpush.msra.mxu0 %v30
    %187 = vmatpush.msra.mxu0 %v29
    %188 = vmatpush.msra.mxu0 %v28
    %189 = vmatpush.msra.mxu0 %v27
    %190 = vmatpush.msra.mxu0 %v26
    %191 = vmatpush.msra.mxu0 %v25
    %192 = vmatpush.msra.mxu0 %v24
    %193 = vmatpush.msra.mxu0 %v23
    %194 = vmatpush.msra.mxu0 %v22
    %195 = vmatpush.msra.mxu0 %v21
    %196 = vmatpush.msra.mxu0 %v20
    %197 = vmatpush.msra.mxu0 %v19
    %198 = vmatpush.msra.mxu0 %v18
    %199 = vmatmul.f32.gmra.mxu0 %v122
    %v200 = vpop.f32.mrf.mxu0
    %v201 = vadd.f32 0.0, %v200
    %202 = vmatmul.f32.gmra.mxu0 %v129
    %v203 = vpop.f32.mrf.mxu0
    %v204 = vadd.f32 0.0, %v203
    %205 = vmatmul.f32.gmra.mxu0 %v136
    %v206 = vpop.f32.mrf.mxu0
    %v207 = vadd.f32 0.0, %v206
    %208 = vmatmul.f32.gmra.mxu0 %v143
    %v209 = vpop.f32.mrf.mxu0
    %v210 = vadd.f32 0.0, %v209
    %211 = vmatmul.f32.gmra.mxu0 %v150
    %v212 = vpop.f32.mrf.mxu0
    %v213 = vadd.f32 0.0, %v212
    %214 = vmatmul.f32.gmra.mxu0 %v157
    %v215 = vpop.f32.mrf.mxu0
    %v216 = vadd.f32 0.0, %v215
    %217 = vdwg.mxu0
    %218 = vmatpush.msra.mxu0 %v49
    %219 = vmatpush.msra.mxu0 %v48
    %220 = vmatpush.msra.mxu0 %v47
    %221 = vmatpush.msra.mxu0 %v46
    %222 = vmatpush.msra.mxu0 %v45
    %223 = vmatpush.msra.mxu0 %v44
    %224 = vmatpush.msra.mxu0 %v43
    %225 = vmatpush.msra.mxu0 %v42
    %226 = vmatpush.msra.mxu0 %v41
    %227 = vmatpush.msra.mxu0 %v40
    %228 = vmatpush.msra.mxu0 %v39
    %229 = vmatpush.msra.mxu0 %v38
    %230 = vmatpush.msra.mxu0 %v37
    %231 = vmatpush.msra.mxu0 %v36
    %232 = vmatpush.msra.mxu0 %v35
    %233 = vmatpush.msra.mxu0 %v34
    %234 = vmatmul.f32.gmra.mxu0 %v123
    %v235 = vpop.f32.mrf.mxu0
    %v236 = vadd.f32 %v201, %v235
    %237 = vmatmul.f32.gmra.mxu0 %v130
    %v238 = vpop.f32.mrf.mxu0
    %v239 = vadd.f32 %v204, %v238
    %240 = vmatmul.f32.gmra.mxu0 %v137
    %v241 = vpop.f32.mrf.mxu0
    %v242 = vadd.f32 %v207, %v241
    %243 = vmatmul.f32.gmra.mxu0 %v144
    %v244 = vpop.f32.mrf.mxu0
    %v245 = vadd.f32 %v210, %v244
    %246 = vmatmul.f32.gmra.mxu0 %v151
    %v247 = vpop.f32.mrf.mxu0
    %v248 = vadd.f32 %v213, %v247
    %249 = vmatmul.f32.gmra.mxu0 %v158
    %v250 = vpop.f32.mrf.mxu0
    %v251 = vadd.f32 %v216, %v250
    %252 = vdwg.mxu0
    %253 = vmatpush.msra.mxu0 %v65
    %254 = vmatpush.msra.mxu0 %v64
    %255 = vmatpush.msra.mxu0 %v63
    %256 = vmatpush.msra.mxu0 %v62
    %257 = vmatpush.msra.mxu0 %v61
    %258 = vmatpush.msra.mxu0 %v60
    %259 = vmatpush.msra.mxu0 %v59
    %260 = vmatpush.msra.mxu0 %v58
    %261 = vmatpush.msra.mxu0 %v57
    %262 = vmatpush.msra.mxu0 %v56
    %263 = vmatpush.msra.mxu0 %v55
    %264 = vmatpush.msra.mxu0 %v54
    %265 = vmatpush.msra.mxu0 %v53
    %266 = vmatpush.msra.mxu0 %v52
    %267 = vmatpush.msra.mxu0 %v51
    %268 = vmatpush.msra.mxu0 %v50
    %269 = vmatmul.f32.gmra.mxu0 %v124
    %v270 = vpop.f32.mrf.mxu0
    %v271 = vadd.f32 %v236, %v270
    %272 = vmatmul.f32.gmra.mxu0 %v131
    %v273 = vpop.f32.mrf.mxu0
    %v274 = vadd.f32 %v239, %v273
    %275 = vmatmul.f32.gmra.mxu0 %v138
    %v276 = vpop.f32.mrf.mxu0
    %v277 = vadd.f32 %v242, %v276
    %278 = vmatmul.f32.gmra.mxu0 %v145
    %v279 = vpop.f32.mrf.mxu0
    %v280 = vadd.f32 %v245, %v279
    %281 = vmatmul.f32.gmra.mxu0 %v152
    %v282 = vpop.f32.mrf.mxu0
    %v283 = vadd.f32 %v248, %v282
    %284 = vmatmul.f32.gmra.mxu0 %v159
    %v285 = vpop.f32.mrf.mxu0
    %v286 = vadd.f32 %v251, %v285
    %287 = vdwg.mxu0
    %288 = vmatpush.msra.mxu0 %v81
    %289 = vmatpush.msra.mxu0 %v80
    %290 = vmatpush.msra.mxu0 %v79
    %291 = vmatpush.msra.mxu0 %v78
    %292 = vmatpush.msra.mxu0 %v77
    %293 = vmatpush.msra.mxu0 %v76
    %294 = vmatpush.msra.mxu0 %v75
    %295 = vmatpush.msra.mxu0 %v74
    %296 = vmatpush.msra.mxu0 %v73
    %297 = vmatpush.msra.mxu0 %v72
    %298 = vmatpush.msra.mxu0 %v71
    %299 = vmatpush.msra.mxu0 %v70
    %300 = vmatpush.msra.mxu0 %v69
    %301 = vmatpush.msra.mxu0 %v68
    %302 = vmatpush.msra.mxu0 %v67
    %303 = vmatpush.msra.mxu0 %v66
    %304 = vmatmul.f32.gmra.mxu0 %v125
    %v305 = vpop.f32.mrf.mxu0
    %v306 = vadd.f32 %v271, %v305
    %307 = vmatmul.f32.gmra.mxu0 %v132
    %v308 = vpop.f32.mrf.mxu0
    %v309 = vadd.f32 %v274, %v308
    %310 = vmatmul.f32.gmra.mxu0 %v139
    %v311 = vpop.f32.mrf.mxu0
    %v312 = vadd.f32 %v277, %v311
    %313 = vmatmul.f32.gmra.mxu0 %v146
    %v314 = vpop.f32.mrf.mxu0
    %v315 = vadd.f32 %v280, %v314
    %316 = vmatmul.f32.gmra.mxu0 %v153
    %v317 = vpop.f32.mrf.mxu0
    %v318 = vadd.f32 %v283, %v317
    %319 = vmatmul.f32.gmra.mxu0 %v160
    %v320 = vpop.f32.mrf.mxu0
    %v321 = vadd.f32 %v286, %v320
    %322 = vdwg.mxu0
    %323 = vmatpush.msra.mxu0 %v97
    %324 = vmatpush.msra.mxu0 %v96
    %325 = vmatpush.msra.mxu0 %v95
    %326 = vmatpush.msra.mxu0 %v94
    %327 = vmatpush.msra.mxu0 %v93
    %328 = vmatpush.msra.mxu0 %v92
    %329 = vmatpush.msra.mxu0 %v91
    %330 = vmatpush.msra.mxu0 %v90
    %331 = vmatpush.msra.mxu0 %v89
    %332 = vmatpush.msra.mxu0 %v88
    %333 = vmatpush.msra.mxu0 %v87
    %334 = vmatpush.msra.mxu0 %v86
    %335 = vmatpush.msra.mxu0 %v85
    %336 = vmatpush.msra.mxu0 %v84
    %337 = vmatpush.msra.mxu0 %v83
    %338 = vmatpush.msra.mxu0 %v82
    %339 = vmatmul.f32.gmra.mxu0 %v126
    %v340 = vpop.f32.mrf.mxu0
    %v341 = vadd.f32 %v306, %v340
    %342 = vmatmul.f32.gmra.mxu0 %v133
    %v343 = vpop.f32.mrf.mxu0
    %v344 = vadd.f32 %v309, %v343
    %345 = vmatmul.f32.gmra.mxu0 %v140
    %v346 = vpop.f32.mrf.mxu0
    %v347 = vadd.f32 %v312, %v346
    %348 = vmatmul.f32.gmra.mxu0 %v147
    %v349 = vpop.f32.mrf.mxu0
    %v350 = vadd.f32 %v315, %v349
    %351 = vmatmul.f32.gmra.mxu0 %v154
    %v352 = vpop.f32.mrf.mxu0
    %v353 = vadd.f32 %v318, %v352
    %354 = vmatmul.f32.gmra.mxu0 %v161
    %v355 = vpop.f32.mrf.mxu0
    %v356 = vadd.f32 %v321, %v355
    %357 = vdwg.mxu0
    %358 = vmatpush.msra.mxu0 %v113
    %359 = vmatpush.msra.mxu0 %v112
    %360 = vmatpush.msra.mxu0 %v111
    %361 = vmatpush.msra.mxu0 %v110
    %362 = vmatpush.msra.mxu0 %v109
    %363 = vmatpush.msra.mxu0 %v108
    %364 = vmatpush.msra.mxu0 %v107
    %365 = vmatpush.msra.mxu0 %v106
    %366 = vmatpush.msra.mxu0 %v105
    %367 = vmatpush.msra.mxu0 %v104
    %368 = vmatpush.msra.mxu0 %v103
    %369 = vmatpush.msra.mxu0 %v102
    %370 = vmatpush.msra.mxu0 %v101
    %371 = vmatpush.msra.mxu0 %v100
    %372 = vmatpush.msra.mxu0 %v99
    %373 = vmatpush.msra.mxu0 %v98
    %374 = vmatmul.f32.gmra.mxu0 %v127
    %v375 = vpop.f32.mrf.mxu0
    %v376 = vadd.f32 %v341, %v375
    %377 = vmatmul.f32.gmra.mxu0 %v134
    %v378 = vpop.f32.mrf.mxu0
    %v379 = vadd.f32 %v344, %v378
    %380 = vmatmul.f32.gmra.mxu0 %v141
    %v381 = vpop.f32.mrf.mxu0
    %v382 = vadd.f32 %v347, %v381
    %383 = vmatmul.f32.gmra.mxu0 %v148
    %v384 = vpop.f32.mrf.mxu0
    %v385 = vadd.f32 %v350, %v384
    %386 = vmatmul.f32.gmra.mxu0 %v155
    %v387 = vpop.f32.mrf.mxu0
    %v388 = vadd.f32 %v353, %v387
    %389 = vmatmul.f32.gmra.mxu0 %v162
    %v390 = vpop.f32.mrf.mxu0
    %v391 = vadd.f32 %v356, %v390
    %392 = vdwg.mxu0
    %393 = vmatpush.msra.mxu0 0.0
    %394 = vmatpush.msra.mxu0 0.0
    %395 = vmatpush.msra.mxu0 0.0
    %396 = vmatpush.msra.mxu0 0.0
    %397 = vmatpush.msra.mxu0 0.0
    %398 = vmatpush.msra.mxu0 0.0
    %399 = vmatpush.msra.mxu0 0.0
    %400 = vmatpush.msra.mxu0 0.0
    %401 = vmatpush.msra.mxu0 %v121
    %402 = vmatpush.msra.mxu0 %v120
    %403 = vmatpush.msra.mxu0 %v119
    %404 = vmatpush.msra.mxu0 %v118
    %405 = vmatpush.msra.mxu0 %v117
    %406 = vmatpush.msra.mxu0 %v116
    %407 = vmatpush.msra.mxu0 %v115
    %408 = vmatpush.msra.mxu0 %v114
    %409 = vmatmul.f32.gmra.mxu0 %v166
    %v410 = vpop.f32.mrf.mxu0
    %v411 = vadd.f32 %v376, %v410
    %412 = vmatmul.f32.gmra.mxu0 %v169
    %v413 = vpop.f32.mrf.mxu0
    %v414 = vadd.f32 %v379, %v413
    %415 = vmatmul.f32.gmra.mxu0 %v172
    %v416 = vpop.f32.mrf.mxu0
    %v417 = vadd.f32 %v382, %v416
    %418 = vmatmul.f32.gmra.mxu0 %v175
    %v419 = vpop.f32.mrf.mxu0
    %v420 = vadd.f32 %v385, %v419
    %421 = vmatmul.f32.gmra.mxu0 %v178
    %v422 = vpop.f32.mrf.mxu0
    %v423 = vadd.f32 %v388, %v422
    %424 = vmatmul.f32.gmra.mxu0 %v181
    %v425 = vpop.f32.mrf.mxu0
    %v426 = vadd.f32 %v391, %v425
    %427 = vdwg.mxu0
    %vm428 = vcmask 400384
    %v429 = vsel %vm428, %v411, 0.0
    %430 = vadd.xlane.f32.xlu0 %v429
    %v431 = vpop.xlane.xlu0 %430
    %v432 = vsel %vm428, %v414, 0.0
    %433 = vadd.xlane.f32.xlu0 %v432
    %v434 = vpop.xlane.xlu0 %433
    %v435 = vsel %vm428, %v417, 0.0
    %436 = vadd.xlane.f32.xlu0 %v435
    %v437 = vpop.xlane.xlu0 %436
    %v438 = vsel %vm428, %v420, 0.0
    %439 = vadd.xlane.f32.xlu0 %v438
    %v440 = vpop.xlane.xlu0 %439
    %v441 = vsel %vm428, %v423, 0.0
    %442 = vadd.xlane.f32.xlu0 %v441
    %v443 = vpop.xlane.xlu0 %442
    %v444 = vsel %vm428, %v426, 0.0
    %445 = vadd.xlane.f32.xlu0 %v444
    %v446 = vpop.xlane.xlu0 %445
    %v447 = vrcp.pop 49.0
    %v448 = vmul.f32 49.0, %v447
    %v449 = vsub.f32 1.0, %v448
    %v450 = vmul.f32 %v447, %v449
    %v451 = vadd.f32 %v447, %v450
    %vm452 = vweird.f32 %v447
    %v453 = vsel %vm452, %v447, %v451
    %v454 = vmul.f32 %v431, %v453
    %v455 = vmul.f32 %v434, %v453
    %v456 = vmul.f32 %v437, %v453
    %v457 = vmul.f32 %v440, %v453
    %v458 = vmul.f32 %v443, %v453
    %v459 = vmul.f32 %v446, %v453
    %v460 = vsub.f32 %v411, %v454
    %v461 = vsub.f32 %v414, %v455
    %v462 = vsub.f32 %v417, %v456
    %v463 = vsub.f32 %v420, %v457
    %v464 = vsub.f32 %v423, %v458
    %v465 = vsub.f32 %v426, %v459
    %v466 = vmul.f32 %v460, %v460
    %v467 = vmul.f32 %v461, %v461
    %v468 = vmul.f32 %v462, %v462
    %v469 = vmul.f32 %v463, %v463
    %v470 = vmul.f32 %v464, %v464
    %v471 = vmul.f32 %v465, %v465
    %v472 = vsel %vm428, %v466, 0.0
    %473 = vadd.xlane.f32.xlu0 %v472
    %v474 = vpop.xlane.xlu0 %473
    %v475 = vsel %vm428, %v467, 0.0
    %476 = vadd.xlane.f32.xlu0 %v475
    %v477 = vpop.xlane.xlu0 %476
    %v478 = vsel %vm428, %v468, 0.0
    %479 = vadd.xlane.f32.xlu0 %v478
    %v480 = vpop.xlane.xlu0 %479
    %v481 = vsel %vm428, %v469, 0.0
    %482 = vadd.xlane.f32.xlu0 %v481
    %v483 = vpop.xlane.xlu0 %482
    %v484 = vsel %vm428, %v470, 0.0
    %485 = vadd.xlane.f32.xlu0 %v484
    %v486 = vpop.xlane.xlu0 %485
    %v487 = vsel %vm428, %v471, 0.0
    %488 = vadd.xlane.f32.xlu0 %v487
    %v489 = vpop.xlane.xlu0 %488
    %v490 = vmul.f32 %v474, %v453
    %v491 = vmul.f32 %v477, %v453
    %v492 = vmul.f32 %v480, %v453
    %v493 = vmul.f32 %v483, %v453
    %v494 = vmul.f32 %v486, %v453
    %v495 = vmul.f32 %v489, %v453
    %v496 = vadd.f32 %v490, 0.001
    %v497 = vadd.f32 %v491, 0.001
    %v498 = vadd.f32 %v492, 0.001
    %v499 = vadd.f32 %v493, 0.001
    %v500 = vadd.f32 %v494, 0.001
    %v501 = vadd.f32 %v495, 0.001
    %v502 = vrsqrt.pop %v496
    %v503 = vmul.f32 %v502, %v496
    %v504 = vmul.f32 %v503, %v502
    %v505 = vmul.f32 0.5, %v504
    %v506 = vsub.f32 1.5, %v505
    %v507 = vmul.f32 %v502, %v506
    %vm508 = vweird.f32 %v496
    %vm509 = vweird.f32 %v502
    %vm510 = vmor %vm508, %vm509
    %v511 = vsel %vm510, %v502, %v507
    %v512 = vrsqrt.pop %v497
    %v513 = vmul.f32 %v512, %v497
    %v514 = vmul.f32 %v513, %v512
    %v515 = vmul.f32 0.5, %v514
    %v516 = vsub.f32 1.5, %v515
    %v517 = vmul.f32 %v512, %v516
    %vm518 = vweird.f32 %v497
    %vm519 = vweird.f32 %v512
    %vm520 = vmor %vm518, %vm519
    %v521 = vsel %vm520, %v512, %v517
    %v522 = vrsqrt.pop %v498
    %v523 = vmul.f32 %v522, %v498
    %v524 = vmul.f32 %v523, %v522
    %v525 = vmul.f32 0.5, %v524
    %v526 = vsub.f32 1.5, %v525
    %v527 = vmul.f32 %v522, %v526
    %vm528 = vweird.f32 %v498
    %vm529 = vweird.f32 %v522
    %vm530 = vmor %vm528, %vm529
    %v531 = vsel %vm530, %v522, %v527
    %v532 = vrsqrt.pop %v499
    %v533 = vmul.f32 %v532, %v499
    %v534 = vmul.f32 %v533, %v532
    %v535 = vmul.f32 0.5, %v534
    %v536 = vsub.f32 1.5, %v535
    %v537 = vmul.f32 %v532, %v536
    %vm538 = vweird.f32 %v499
    %vm539 = vweird.f32 %v532
    %vm540 = vmor %vm538, %vm539
    %v541 = vsel %vm540, %v532, %v537
    %v542 = vrsqrt.pop %v500
    %v543 = vmul.f32 %v542, %v500
    %v544 = vmul.f32 %v543, %v542
    %v545 = vmul.f32 0.5, %v544
    %v546 = vsub.f32 1.5, %v545
    %v547 = vmul.f32 %v542, %v546
    %vm548 = vweird.f32 %v500
    %vm549 = vweird.f32 %v542
    %vm550 = vmor %vm548, %vm549
    %v551 = vsel %vm550, %v542, %v547
    %v552 = vrsqrt.pop %v501
    %v553 = vmul.f32 %v552, %v501
    %v554 = vmul.f32 %v553, %v552
    %v555 = vmul.f32 0.5, %v554
    %v556 = vsub.f32 1.5, %v555
    %v557 = vmul.f32 %v552, %v556
    %vm558 = vweird.f32 %v501
    %vm559 = vweird.f32 %v552
    %vm560 = vmor %vm558, %vm559
    %v561 = vsel %vm560, %v552, %v557
    %v562 = vld [vmem:[%s2] sm:$0xff]
    %v563 = vld [vmem:[%s2 + $0x8] sm:$0xff]
    %v564 = vld [vmem:[%s2 + $0x10] sm:$0xff]
    %v565 = vld [vmem:[%s2 + $0x18] sm:$0xff]
    %v566 = vld [vmem:[%s2 + $0x20] sm:$0xff]
    %v567 = vld [vmem:[%s2 + $0x28] sm:$0xff]
    %v568 = vmul.f32 %v562, %v511
    %v569 = vmul.f32 %v563, %v521
    %v570 = vmul.f32 %v564, %v531
    %v571 = vmul.f32 %v565, %v541
    %v572 = vmul.f32 %v566, %v551
    %v573 = vmul.f32 %v567, %v561
    %575 = vset.pattern.permute.xlu0 0
    %576 = vperm.xlu0 %575, %v568
    %v577 = vpop.permute.xlu0 %576
    %580 = vset.pattern.permute.xlu0 0
    %581 = vperm.xlu0 %580, %v569
    %v582 = vpop.permute.xlu0 %581
    %585 = vset.pattern.permute.xlu0 0
    %586 = vperm.xlu0 %585, %v570
    %v587 = vpop.permute.xlu0 %586
    %590 = vset.pattern.permute.xlu0 0
    %591 = vperm.xlu0 %590, %v571
    %v592 = vpop.permute.xlu0 %591
    %595 = vset.pattern.permute.xlu0 0
    %596 = vperm.xlu0 %595, %v572
    %v597 = vpop.permute.xlu0 %596
    %600 = vset.pattern.permute.xlu0 0
    %601 = vperm.xlu0 %600, %v573
    %v602 = vpop.permute.xlu0 %601
    %v604 = vmul.f32 %v460, %v577
    %v605 = vmul.f32 %v461, %v582
    %v606 = vmul.f32 %v462, %v587
    %v607 = vmul.f32 %v463, %v592
    %v608 = vmul.f32 %v464, %v597
    %v609 = vmul.f32 %v465, %v602
    %v610 = vld [vmem:[%s3] sm:$0xff]
    %v611 = vld [vmem:[%s3 + $0x8] sm:$0xff]
    %v612 = vld [vmem:[%s3 + $0x10] sm:$0xff]
    %v613 = vld [vmem:[%s3 + $0x18] sm:$0xff]
    %v614 = vld [vmem:[%s3 + $0x20] sm:$0xff]
    %v615 = vld [vmem:[%s3 + $0x28] sm:$0xff]
    %617 = vset.pattern.permute.xlu0 0
    %618 = vperm.xlu0 %617, %v610
    %v619 = vpop.permute.xlu0 %618
    %622 = vset.pattern.permute.xlu0 0
    %623 = vperm.xlu0 %622, %v611
    %v624 = vpop.permute.xlu0 %623
    %627 = vset.pattern.permute.xlu0 0
    %628 = vperm.xlu0 %627, %v612
    %v629 = vpop.permute.xlu0 %628
    %632 = vset.pattern.permute.xlu0 0
    %633 = vperm.xlu0 %632, %v613
    %v634 = vpop.permute.xlu0 %633
    %637 = vset.pattern.permute.xlu0 0
    %638 = vperm.xlu0 %637, %v614
    %v639 = vpop.permute.xlu0 %638
    %642 = vset.pattern.permute.xlu0 0
    %643 = vperm.xlu0 %642, %v615
    %v644 = vpop.permute.xlu0 %643
    %v646 = vadd.f32 %v604, %v619
    %v647 = vadd.f32 %v605, %v624
    %v648 = vadd.f32 %v606, %v629
    %v649 = vadd.f32 %v607, %v634
    %v650 = vadd.f32 %v608, %v639
    %v651 = vadd.f32 %v609, %v644
    %v652 = vmax.f32 %v646, 0.0
    %v653 = vmax.f32 %v647, 0.0
    %v654 = vmax.f32 %v648, 0.0
    %v655 = vmax.f32 %v649, 0.0
    %v656 = vmax.f32 %v650, 0.0
    %v657 = vmax.f32 %v651, 0.0
    %658 = vst.msk [vmem:[#allocation2] sm:$0xff] %vm428, %v652
    %659 = vst.msk [vmem:[#allocation2 + $0x8] sm:$0xff] %vm428, %v653
    %660 = vst.msk [vmem:[#allocation2 + $0x10] sm:$0xff] %vm428, %v654
    %661 = vst.msk [vmem:[#allocation2 + $0x18] sm:$0xff] %vm428, %v655
    %662 = vst.msk [vmem:[#allocation2 + $0x20] sm:$0xff] %vm428, %v656
    %663 = vst.msk [vmem:[#allocation2 + $0x28] sm:$0xff] %vm428, %v657
    // Predicated region
    $region18: #{tpu_custom_call.1} parent=1 // pred_check
      _
    $region19: #{tpu_custom_call.1} parent=1 // pred_check_branch
      %665 = sbr.rel (0) target = $region21
    $region20: #{tpu_custom_call.1} parent=1 // pred_region
      %667 = vsyncadd [#allocation3], 0
      %s668 = sshll.u32 [#allocation2], 4
      %s669 = int_to_ptr.vmem [resolvable:$true] %s668
      %s670 = sshll.u32 %s4, 4
      %s671 = int_to_ptr.hbm [resolvable:$true] %s670
      %676 = dma.vmem_to_hbm [thread:$0]  %s669, 768, %s671, [#allocation3], 128, 128, 8
    $region21: #{tpu_custom_call.1} parent=1 // pred_fallthru
      _
    // Predicated region
    $region22: #{tpu_custom_call.1} parent=1 // pred_check
      _
    $region23: #{tpu_custom_call.1} parent=1 // pred_check_branch
      %678 = sbr.rel (0) target = $region25
    $region24: #{tpu_custom_call.1} parent=1 // pred_region
      %680 = dma.done [#allocation3], 768
    $region25: #{tpu_custom_call.1} parent=1 // pred_fallthru
      _
    %681 = vsyncpa [#allocation3], 1

</llo_original>
